<compile_context>
chip_gen: v7x
topology: tpu7x:2x2x1
jax: 0.10.0
libtpu: 0.0.40
codegen_flags: <defaults>
</compile_context>

<pallas_src>
import math

import jax
import jax.numpy as jnp
from jax.experimental import pallas as pl
from jax.experimental.pallas import tpu as pltpu

DISTILL_DIM_INFO = {
    'timm_convnext_tiny': (49, 768), 'cifar_resnet32x4': (64, 256),
    'cifar_resnet50': (64, 64), 'cifar_vgg13': (16, 512),
    'cifar_mobile_half': (4, 1280), 'timm_resnet18': (49, 512),
    'mobilenet_v2': (49, 1280), 'timm_mixer_b16_224': (196, 768),
    'timm_resmlp_12_224': (196, 384),
    'timm_swin_tiny_patch4_window7_224': (49, 768),
    'timm_swin_pico_patch4_window7_224': (49, 384),
    'timm_vit_small_patch16_224': (197, 384),
    'timm_deit_tiny_patch16_224': (197, 192),
}


def _round_up(v, m):
    return ((v + m - 1) // m) * m


def _vmem_limit_bytes(est):
    """Generation-aware VMEM limit: ~75% of the chip's per-TC VMEM capacity
    (v7x has only 64 MiB/TC), fallback 48 MiB; at least 32 MiB / 3x estimate."""
    cap = 48 * 2 ** 20
    try:
        cap = int(0.75 * int(pltpu.get_tpu_info().vmem_capacity_bytes))
    except Exception:
        pass
    return int(min(cap, max(32 * 2 ** 20, 3 * est)))


# ----------------------------- Pallas kernels --------------------------------

def _mm_bias_relu_kernel(x_ref, w_ref, b_ref, o_ref):
    """Single-K-step kernel: o = relu(x @ w + bias).  No accumulator scratch,
    no init/finalize gates; x is cast to the MXU dtype (bf16) in-register."""
    x = x_ref[...].astype(w_ref.dtype)
    acc = jnp.dot(x, w_ref[...], preferred_element_type=jnp.float32)
    o_ref[...] = jnp.maximum(acc + b_ref[...], 0.0).astype(o_ref.dtype)


def _mm_bias_relu_acc_kernel(x_ref, w_ref, b_ref, o_ref, acc_ref):
    """Fallback multi-K-step kernel (only used when K > 2048, i.e. never for
    the DISTILL_DIM_INFO models): classic accumulator pattern."""
    k = pl.program_id(2)

    @pl.when(k == 0)
    def _():
        acc_ref[...] = jnp.zeros_like(acc_ref)

    acc_ref[...] += jnp.dot(x_ref[...].astype(w_ref.dtype), w_ref[...],
                            preferred_element_type=jnp.float32)

    @pl.when(k == pl.num_programs(2) - 1)
    def _():
        o_ref[...] = jnp.maximum(acc_ref[...] + b_ref[...], 0.0).astype(o_ref.dtype)


def _pick_tiles(M, N, tm_max, tn_max):
    """Pick lane/sublane-friendly tiles without padding K and with at most a
    tiny (<=15 row) M pad.  Ensure >=2 'parallel' blocks for v7x when the
    problem is big enough to split."""
    # N: pad columns to a lane-dense multiple of 128 (pads only w/bias/output).
    nr = _round_up(N, 128)
    if nr <= tn_max:
        tn, Np = nr, nr
    else:
        tn = tn_max
        Np = _round_up(N, tn)
    # M: multiple of 16 for dense bf16 sublane packing.
    mr = _round_up(M, 16)
    if mr <= tm_max:
        tm, Mp = mr, mr
    else:
        tm = tm_max
        Mp = _round_up(M, tm)
    # v7x has 2 TensorCores: make sure there are >=2 parallel blocks if we can.
    if Mp // tm == 1 and Np // tn == 1:
        if Mp >= 256 and (Mp // 2) % 16 == 0:
            tm = Mp // 2
        elif Np >= 256 and (Np // 2) % 128 == 0:
            tn = Np // 2
    return tm, tn, Mp, Np


def matmul_bias_relu(x2d, w, bias_row, *, out_dtype=jnp.bfloat16,
                     tm_max=512, tn_max=512, k_single_max=2048, tk_max=512):
    """relu(x2d @ w + bias) as a tiled Pallas TPU kernel.

    x2d: (M, K) float (kept un-padded along K, cast to w's dtype in-kernel),
    w:   (K, N) bf16 with BN scale pre-folded into its columns,
    bias_row: (1, N) f32 folded conv-bias/BN bias.
    """
    M, K = x2d.shape
    K2, N = w.shape
    assert K2 == K and bias_row.shape == (1, N)

    tm, tn, Mp, Np = _pick_tiles(M, N, tm_max, tn_max)

    single_k = K <= k_single_max
    if single_k:
        tk, Kp = K, K                      # block dim == full array dim: legal, no pad
    else:
        tk = tk_max
        Kp = _round_up(K, tk)              # fallback only (never hit by DISTILL models)

    if (Mp, Kp) != (M, K):
        x2d = jnp.pad(x2d, ((0, Mp - M), (0, Kp - K)))
    if (Kp, Np) != (K, N):
        w = jnp.pad(w, ((0, Kp - K), (0, Np - N)))
    if Np != N:
        bias_row = jnp.pad(bias_row, ((0, 0), (0, Np - N)))

    xb = x2d.dtype.itemsize
    wb = w.dtype.itemsize
    ob = jnp.dtype(out_dtype).itemsize
    est = (2 * (tm * tk * xb + tk * tn * wb)   # double-buffered x / w tiles
           + 2 * tm * tn * ob                  # double-buffered output tile
           + 2 * 8 * tn * 4)                   # bias tile (sublane-padded)
    if not single_k:
        est += tm * tn * 4                     # accumulator scratch
    vmem_limit = _vmem_limit_bytes(est)

    if single_k:
        out = pl.pallas_call(
            _mm_bias_relu_kernel,
            out_shape=jax.ShapeDtypeStruct((Mp, Np), out_dtype),
            grid_spec=pltpu.PrefetchScalarGridSpec(
                num_scalar_prefetch=0,
                grid=(Mp // tm, Np // tn),
                in_specs=[
                    pl.BlockSpec((tm, Kp), lambda i, j: (i, 0)),
                    pl.BlockSpec((Kp, tn), lambda i, j: (0, j)),
                    pl.BlockSpec((1, tn), lambda i, j: (0, j)),
                ],
                out_specs=pl.BlockSpec((tm, tn), lambda i, j: (i, j)),
            ),
            compiler_params=pltpu.CompilerParams(
                dimension_semantics=("parallel", "parallel"),
                vmem_limit_bytes=vmem_limit,
            ),
        )(x2d, w, bias_row)
    else:
        out = pl.pallas_call(
            _mm_bias_relu_acc_kernel,
            out_shape=jax.ShapeDtypeStruct((Mp, Np), out_dtype),
            grid_spec=pltpu.PrefetchScalarGridSpec(
                num_scalar_prefetch=0,
                grid=(Mp // tm, Np // tn, Kp // tk),
                in_specs=[
                    pl.BlockSpec((tm, tk), lambda i, j, k: (i, k)),
                    pl.BlockSpec((tk, tn), lambda i, j, k: (k, j)),
                    pl.BlockSpec((1, tn), lambda i, j, k: (0, j)),
                ],
                out_specs=pl.BlockSpec((tm, tn), lambda i, j, k: (i, j)),
                scratch_shapes=[pltpu.VMEM((tm, tn), jnp.float32)],
            ),
            compiler_params=pltpu.CompilerParams(
                dimension_semantics=("parallel", "parallel", "arbitrary"),
                vmem_limit_bytes=vmem_limit,
            ),
        )(x2d, w, bias_row)

    if (Mp, Np) != (M, N):
        out = out[:M, :N]
    return out


# --------------------------- CNN_Trans wrapper ------------------------------

class CNNTransPallas:
    """Pallas re-implementation of CNN_Trans.forward (inference BN semantics)."""

    def __init__(self, in_dim, out_dim, model_name, model_t, key,
                 out_dtype=jnp.bfloat16):
        # TODO(synk): the PyTorch module emits float32; pass out_dtype=jnp.float32
        # to reproduce the exact output dtype (costs ~2x output HBM bytes).
        L, _ = DISTILL_DIM_INFO[model_name]
        H = W = int(math.sqrt(L))
        if H * W != L:
            raise ValueError(f"non-square student token grid L={L}")
        L_T, _ = DISTILL_DIM_INFO[model_t]
        H_T = W_T = int(math.sqrt(L_T))
        if H_T * W_T != L_T:
            raise ValueError(f"non-square teacher token grid L_T={L_T}")

        self.in_dim, self.out_dim = in_dim, out_dim
        self.out_dtype = out_dtype
        self.eps = 1e-5
        self.head = None
        self.w_lin = None

        k = jax.random.split(key, 7)
        if H_T > H:
            self.head = (H_T * W_T) // (H * W)
            half = int(self.head ** 0.5)
            if half * half != self.head:
                raise ValueError(f"head={self.head} is not a perfect square")
            # nn.Linear(in_dim, head*in_dim, bias=False): weight (head*in_dim, in_dim)
            self.w_lin = 0.1 * jax.random.normal(
                k[0], (self.head * in_dim, in_dim), jnp.float32)

        # nn.Conv2d(in_dim, out_dim, 1, 1, 0): weight (out_dim, in_dim, 1, 1) squeezed
        self.w_conv = 0.1 * jax.random.normal(k[1], (out_dim, in_dim), jnp.float32)
        self.b_conv = 0.1 * jax.random.normal(k[2], (out_dim,), jnp.float32)
        # BatchNorm2d(out_dim) params + running stats (deterministic init).
        # TODO(synk): BatchNorm uses inference (running-stats) semantics; PyTorch
        # training-mode batch statistics are not reproduced.
        self.bn_gamma = 1.0 + 0.1 * jax.random.normal(k[3], (out_dim,), jnp.float32)
        self.bn_beta = 0.1 * jax.random.normal(k[4], (out_dim,), jnp.float32)
        self.bn_mean = 0.1 * jax.random.normal(k[5], (out_dim,), jnp.float32)
        self.bn_var = jnp.abs(jax.random.normal(k[6], (out_dim,), jnp.float32)) + 0.5

        # Fold conv bias + BN into per-output-channel scale/bias; the scale is
        # additionally folded into the weight columns (f32, before bf16 cast)
        # so the kernel epilogue is just add-bias + ReLU.
        scale = self.bn_gamma / jnp.sqrt(self.bn_var + self.eps)
        bias = (self.b_conv - self.bn_mean) * scale + self.bn_beta

        if self.head is not None:
            # Algebraic fusion of liner_proj and the 1x1 conv:
            #   z_h = (x @ W_lin_h^T) @ W_conv^T = x @ (W_lin_h^T @ W_conv^T)
            # => one combined weight (in_dim, head*out_dim); BN scale/bias tile
            #    across heads.  Exact: conv/BN/ReLU are per-channel and the
            #    pixel-shuffle views move whole channel blocks.
            w_lin_r = self.w_lin.reshape(self.head, in_dim, in_dim)  # (h, o, c)
            w_comb = jnp.einsum('hoc,po->chp', w_lin_r, self.w_conv)
            w_comb = w_comb.reshape(in_dim, self.head * out_dim)
            scale_cols = jnp.tile(scale, self.head)
            bias_cols = jnp.tile(bias, self.head)
        else:
            w_comb = jnp.transpose(self.w_conv)          # (in_dim, out_dim)
            scale_cols = scale
            bias_cols = bias

        self.w_mx = (w_comb * scale_cols[None, :]).astype(jnp.bfloat16)
        self.bias_row = bias_cols[None, :].astype(jnp.float32)

    def __call__(self, x):
        # x: (B, C, H, W) NCHW, exactly like the PyTorch module.
        B, C, H, W = x.shape
        if self.head is not None:
            half = int(self.head ** 0.5)
            # x.view(B,C,H*W).permute(0,2,1) -> rows are token positions.
            # TODO(synk): this permute and the final NCHW permute remain XLA-side
            # transposes because the module's NCHW interface mandates them; keep
            # the output channels-last if the distillation loss ever allows it.
            x2 = jnp.transpose(x.reshape(B, C, H * W), (0, 2, 1)).reshape(B * H * W, C)
            # Fused liner_proj + conv1x1 + BN + ReLU: one tiled matmul kernel.
            y = matmul_bias_relu(x2, self.w_mx, self.bias_row,
                                 out_dtype=self.out_dtype)
            # Pixel-shuffle view chain of the reference, applied once to the
            # final output (channel blocks of out_dim instead of in_dim).
            y = y.reshape(B, H, W, self.head * self.out_dim)
            y = y.reshape(B, H * half, W * half, self.out_dim)
            return jnp.transpose(y, (0, 3, 2, 1))        # (B, out_dim, W*half, H*half)

        # No upsampling: projector only (conv1x1 + BN + ReLU fused).
        xm = jnp.transpose(x, (0, 2, 3, 1)).reshape(B * H * W, C)
        y = matmul_bias_relu(xm, self.w_mx, self.bias_row, out_dtype=self.out_dtype)
        y = y.reshape(B, H, W, self.out_dim)
        return jnp.transpose(y, (0, 3, 1, 2))            # NCHW


# ------------------------- pure-JAX reference --------------------------------

def reference_forward(mod, x):
    """Pure-JAX f32 reference of the exact CNN_Trans math (eval-mode BN)."""
    B, C, H, W = x.shape
    if mod.w_lin is not None:
        half = int(mod.head ** 0.5)
        x2 = jnp.transpose(x.reshape(B, C, H * W), (0, 2, 1))
        y = jnp.einsum('blc,kc->blk', x2, mod.w_lin)
        y = y.reshape(B, H, W, C * mod.head).reshape(B, H * half, W * half, C)
        x = jnp.transpose(y, (0, 3, 2, 1))
    conv = jnp.einsum('oc,bchw->bohw', mod.w_conv, x) + mod.b_conv[None, :, None, None]
    inv_std = 1.0 / jnp.sqrt(mod.bn_var + mod.eps)
    bn = ((conv - mod.bn_mean[None, :, None, None]) * inv_std[None, :, None, None]
          * mod.bn_gamma[None, :, None, None] + mod.bn_beta[None, :, None, None])
    return jnp.maximum(bn, 0.0)


def _check(out, ref, name):
    out = out.astype(jnp.float32)
    err = float(jnp.max(jnp.abs(out - ref)))
    rel = float(jnp.linalg.norm(out - ref)) / (float(jnp.linalg.norm(ref)) + 1e-6)
    # bf16 MXU operands (scale folded into weights) + bf16 output stream.
    assert err < 5e-2 and rel < 2e-2, (name, err, rel)


# --------------------------------- main ---------------------------------------

if __name__ == "__main__":
    key = jax.random.PRNGKey(0)
    kx, kp, kx2, kp2 = jax.random.split(key, 4)

    # --- upsampling path (liner_proj present): student 2x2 -> teacher 8x8 ---
    #   'cifar_mobile_half': L=4 -> H=W=2; 'cifar_resnet32x4': L=64 -> 8x8
    #   => head=16, half=4
    B, in_dim, out_dim = 2, 8, 16
    model_name, model_t = 'cifar_mobile_half', 'cifar_resnet32x4'
    L, _ = DISTILL_DIM_INFO[model_name]
    H = W = int(math.sqrt(L))
    x = jax.random.normal(kx, (B, in_dim, H, W), jnp.float32)

    mod = CNNTransPallas(in_dim, out_dim, model_name, model_t, kp)
    out = jax.block_until_ready(mod(x))
    ref = reference_forward(mod, x)
    assert out.shape == ref.shape == (B, out_dim, W * 4, H * 4), (out.shape, ref.shape)
    _check(out, ref, "upsample_path")

    # --- identity-resolution path (no liner_proj): projector only ---
    model_name2 = model_t2 = 'cifar_resnet32x4'      # H_T == H -> head is None
    L2, _ = DISTILL_DIM_INFO[model_name2]
    H2 = W2 = int(math.sqrt(L2))
    x2 = jax.random.normal(kx2, (B, in_dim, H2, W2), jnp.float32)

    mod2 = CNNTransPallas(in_dim, out_dim, model_name2, model_t2, kp2)
    out2 = jax.block_until_ready(mod2(x2))
    ref2 = reference_forward(mod2, x2)
    assert out2.shape == ref2.shape == (B, out_dim, H2, W2), (out2.shape, ref2.shape)
    _check(out2, ref2, "projector_only_path")

    print("KERNEL_OK")
</pallas_src>

<mosaic_0001>
module attributes {stable_mosaic.version = 11 : i64} {
  func.func @_mm_bias_relu_kernel(%arg0: i32, %arg1: i32, %arg2: memref<16x8xf32, #tpu.memory_space<vmem>>, %arg3: memref<8x128xbf16, #tpu.memory_space<vmem>>, %arg4: memref<1x128xf32, #tpu.memory_space<vmem>>, %arg5: memref<16x128xbf16, #tpu.memory_space<vmem>>) attributes {dimension_semantics = [#tpu.dimension_semantics<parallel>, #tpu.dimension_semantics<parallel>], iteration_bounds = array<i64: 1, 2>, scalar_prefetch = 0 : i64, scratch_operands = 0 : i64, tpu.core_type = #tpu.core_type<tc>, window_params = [{transform_indices = @transform_0, window_bounds = array<i64: 16, 8>}, {transform_indices = @transform_1, window_bounds = array<i64: 8, 128>}, {transform_indices = @transform_2, window_bounds = array<i64: 1, 128>}, {transform_indices = @transform_3, window_bounds = array<i64: 16, 128>}]} {
    %c0 = arith.constant 0 : index
    %c0_0 = arith.constant 0 : index
    %0 = vector.load %arg2[%c0, %c0_0] : memref<16x8xf32, #tpu.memory_space<vmem>>, vector<16x8xf32>
    %1 = arith.truncf %0 : vector<16x8xf32> to vector<16x8xbf16>
    %c0_1 = arith.constant 0 : index
    %c0_2 = arith.constant 0 : index
    %2 = vector.load %arg3[%c0_1, %c0_2] : memref<8x128xbf16, #tpu.memory_space<vmem>>, vector<8x128xbf16>
    %cst = arith.constant dense<0.000000e+00> : vector<16x128xf32>
    %3 = tpu.matmul %1, %2, %cst {dimension_numbers = #tpu.dot_dimension_numbers<[1], [0], [0], [1], [0, 0, 1, 1], [], []>} : vector<16x8xbf16>, vector<8x128xbf16>, vector<16x128xf32> -> vector<16x128xf32>
    %c0_3 = arith.constant 0 : index
    %c0_4 = arith.constant 0 : index
    %4 = vector.load %arg4[%c0_3, %c0_4] : memref<1x128xf32, #tpu.memory_space<vmem>>, vector<1x128xf32>
    %5 = vector.broadcast %4 : vector<1x128xf32> to vector<16x128xf32>
    %6 = arith.addf %3, %5 : vector<16x128xf32>
    %cst_5 = arith.constant 0.000000e+00 : f32
    %7 = vector.broadcast %cst_5 : f32 to vector<16x128xf32>
    %8 = arith.maximumf %6, %7 : vector<16x128xf32>
    %9 = arith.truncf %8 : vector<16x128xf32> to vector<16x128xbf16>
    %c0_6 = arith.constant 0 : index
    %c0_7 = arith.constant 0 : index
    %10 = vector.load %arg5[%c0_6, %c0_7] : memref<16x128xbf16, #tpu.memory_space<vmem>>, vector<16x128xbf16>
    tpu.vector_store %arg5[%c0_6, %c0_7], %9 {strides = array<i32>} : memref<16x128xbf16, #tpu.memory_space<vmem>>, vector<16x128xbf16>,
    return
  }
  func.func @transform_0(%arg0: i32, %arg1: i32) -> (i32, i32) {
    %c0_i32 = arith.constant 0 : i32
    %c0_i32_0 = arith.constant 0 : i32
    return %arg0, %c0_i32 : i32, i32
  }
  func.func @transform_1(%arg0: i32, %arg1: i32) -> (i32, i32) {
    %c0_i32 = arith.constant 0 : i32
    %c0_i32_0 = arith.constant 0 : i32
    return %c0_i32, %arg1 : i32, i32
  }
  func.func @transform_2(%arg0: i32, %arg1: i32) -> (i32, i32) {
    %c0_i32 = arith.constant 0 : i32
    %c0_i32_0 = arith.constant 0 : i32
    return %c0_i32, %arg1 : i32, i32
  }
  func.func @transform_3(%arg0: i32, %arg1: i32) -> (i32, i32) {
    %c0_i32 = arith.constant 0 : i32
    return %arg0, %arg1 : i32, i32
  }
}

</mosaic_0001>

<llo_original>
// kernel: tpu_custom_call.1
$region0: #{tpu_custom_call.1}
  #allocation0 [shape = 'u32[]', space=smem, size = 0x4, offset = 0x4, fixed_abs, tag = 'smem constant byte address 0x4 - core index']
  #allocation1 [shape = 'u32[144,128]{1,0:T(1,128)}', space=vmem, size = 0x12000, scoped, tag = 'internal scratch']
  %s0 = inlined_call_operand.vmem [shape: f32[16,8], index: 0, kind: input, shape index: {}]
  %s1 = inlined_call_operand.vmem [shape: bf16[8,256], index: 1, kind: input, shape index: {}]
  %s2 = inlined_call_operand.vmem [shape: f32[1,256], index: 2, kind: input, shape index: {}]
  %s3 = inlined_call_operand.hbm [shape: bf16[16,256], index: 3, kind: output, shape index: {}]
  %s4 = sld [smem:[#allocation0]]
  $region45: #{tpu_custom_call.1} parent=0
    _
  %s6 = ssub.s32 1, %s4
  %s7 = scalar_select 0, %s6, %s4
  $region1: #{tpu_custom_call.1} parent=0
    #allocation2 [shape = 'u8[8192]{0}', space=vmem, size = 0x2000, scoped, tag = 'output window, operand 0']
    #allocation3 [shape = 's32[2]{0}', space=sflag, size = 0x8, scoped, tag = 'scoped memory for tpu_custom_call.1']
    %8 = vsyncpa [#allocation3], 0
    %s9 = scalar_lea.sflag [#allocation3], 1
    %10 = vsyncpa %s9, 0
    loop: start=0, step=1, limit=4
    $region2: #{tpu_custom_call.1} parent=1 // loop_pre_header
      _
    $region3: #{tpu_custom_call.1} parent=1 // loop_header
      %s12 = sphi 0, %s16
      %p13 = scmp.ge.s32.totalorder %s12, 4
      %s19 = sphi 0, %s31
      %s20 = sphi 0, %s27
      %s21 = sphi 0, %s19
      %s22 = sphi 0, %s20
      %s23 = sphi 0, %s21
      %s24 = sphi 0, %s22
      %s34 = sphi 0, %s36
      %s37 = sphi 0, %s34
      %s38 = sphi 0, %s37
      %s54 = sphi 0, %s38
      %s60 = sphi 0, %s62
      %s63 = sphi 0, %s60
      %s64 = sphi 0, %s63
      %s80 = sphi 0, %s64
      %s86 = sphi 0, %s88
      %s89 = sphi 0, %s86
      %s90 = sphi 0, %s89
      %s106 = sphi 0, %s90
      %s114 = sphi 0, %s116
      %s117 = sphi 0, %s114
      %s118 = sphi 0, %s117
      %s134 = sphi 0, %s118
    $region4: #{tpu_custom_call.1} parent=1 // loop_header_branch
      %15 = sbr.rel (%p13) target = $region8
    $region5: #{tpu_custom_call.1} parent=1 // loop_body
      %s17 = ssub.s32 %s12, 1
      %s18 = ssub.s32 %s12, 2
      %s25 = sadd.s32 1, %s20
      %p26 = scmp.ge.s32.totalorder %s25, 2
      %s27 = scalar_select %p26, 0, %s25
      %s28 = sadd.s32 1, %s19
      %s29 = scalar_select %p26, %s28, %s19
      %p30 = scmp.ge.s32.totalorder %s29, 1
      %s31 = scalar_select %p30, 0, %s29
      %s32 = ssub.s32 %s19, %s31
      %p33 = scmp.eq.s32.totalorder %s32, 0
      %s35 = sadd.s32 %s34, 1
      %s36 = scalar_select %p33, %s34, %s35
      %p39 = pneg %p33
      %p40 = scmp.eq.s32.totalorder %s12, 1
      %p41 = por %p39, %p40
      %p42 = scmp.ne.s32.totalorder %s34, %s37
      %p43 = scmp.eq.s32.totalorder %s12, 0
      %p44 = por %p42, %p43
      %p45 = scmp.ne.s32.totalorder %s34, %s37
      %p46 = scmp.eq.s32.totalorder %s17, 1
      %p47 = por %p45, %p46
      %p48 = scmp.ne.s32.totalorder %s37, %s38
      %p49 = scmp.eq.s32.totalorder %s17, 0
      %p50 = por %p48, %p49
      %p51 = scmp.ne.s32.totalorder %s37, %s38
      %p52 = scmp.eq.s32.totalorder %s18, 1
      %p53 = por %p51, %p52
      %p55 = scmp.ne.s32.totalorder %s38, %s54
      %p56 = scmp.eq.s32.totalorder %s18, 0
      %p57 = por %p55, %p56
      %s58 = ssub.s32 %s20, %s27
      %p59 = scmp.eq.s32.totalorder %s58, 0
      %s61 = sadd.s32 %s60, 1
      %s62 = scalar_select %p59, %s60, %s61
      %p65 = pneg %p59
      %p66 = scmp.eq.s32.totalorder %s12, 1
      %p67 = por %p65, %p66
      %p68 = scmp.ne.s32.totalorder %s60, %s63
      %p69 = scmp.eq.s32.totalorder %s12, 0
      %p70 = por %p68, %p69
      %p71 = scmp.ne.s32.totalorder %s60, %s63
      %p72 = scmp.eq.s32.totalorder %s17, 1
      %p73 = por %p71, %p72
      %p74 = scmp.ne.s32.totalorder %s63, %s64
      %p75 = scmp.eq.s32.totalorder %s17, 0
      %p76 = por %p74, %p75
      %p77 = scmp.ne.s32.totalorder %s63, %s64
      %p78 = scmp.eq.s32.totalorder %s18, 1
      %p79 = por %p77, %p78
      %p81 = scmp.ne.s32.totalorder %s64, %s80
      %p82 = scmp.eq.s32.totalorder %s18, 0
      %p83 = por %p81, %p82
      %s84 = ssub.s32 %s20, %s27
      %p85 = scmp.eq.s32.totalorder %s84, 0
      %s87 = sadd.s32 %s86, 1
      %s88 = scalar_select %p85, %s86, %s87
      %p91 = pneg %p85
      %p92 = scmp.eq.s32.totalorder %s12, 1
      %p93 = por %p91, %p92
      %p94 = scmp.ne.s32.totalorder %s86, %s89
      %p95 = scmp.eq.s32.totalorder %s12, 0
      %p96 = por %p94, %p95
      %p97 = scmp.ne.s32.totalorder %s86, %s89
      %p98 = scmp.eq.s32.totalorder %s17, 1
      %p99 = por %p97, %p98
      %p100 = scmp.ne.s32.totalorder %s89, %s90
      %p101 = scmp.eq.s32.totalorder %s17, 0
      %p102 = por %p100, %p101
      %p103 = scmp.ne.s32.totalorder %s89, %s90
      %p104 = scmp.eq.s32.totalorder %s18, 1
      %p105 = por %p103, %p104
      %p107 = scmp.ne.s32.totalorder %s90, %s106
      %p108 = scmp.eq.s32.totalorder %s18, 0
      %p109 = por %p107, %p108
      %s110 = ssub.s32 %s19, %s31
      %s111 = ssub.s32 %s20, %s27
      %s112 = sor.u32 %s110, %s111
      %p113 = scmp.eq.s32.totalorder %s112, 0
      %s115 = sadd.s32 %s114, 1
      %s116 = scalar_select %p113, %s114, %s115
      %p119 = pneg %p113
      %p120 = scmp.eq.s32.totalorder %s12, 1
      %p121 = por %p119, %p120
      %p122 = scmp.ne.s32.totalorder %s114, %s117
      %p123 = scmp.eq.s32.totalorder %s12, 0
      %p124 = por %p122, %p123
      %p125 = scmp.ne.s32.totalorder %s114, %s117
      %p126 = scmp.eq.s32.totalorder %s17, 1
      %p127 = por %p125, %p126
      %p128 = scmp.ne.s32.totalorder %s117, %s118
      %p129 = scmp.eq.s32.totalorder %s17, 0
      %p130 = por %p128, %p129
      %p131 = scmp.ne.s32.totalorder %s117, %s118
      %p132 = scmp.eq.s32.totalorder %s18, 1
      %p133 = por %p131, %p132
      %p135 = scmp.ne.s32.totalorder %s118, %s134
      %p136 = scmp.eq.s32.totalorder %s18, 0
      %p137 = por %p135, %p136
      %p138 = scmp.le.s32.totalorder 1, %s12
      %p139 = scmp.lt.s32.totalorder %s12, 3
      %p140 = pnand %p138, %p139
      %p141 = pneg %p140
      // Predicated region
      $region9: #{tpu_custom_call.1} parent=5 // pred_check
        _
      $region10: #{tpu_custom_call.1} parent=5 // pred_check_branch
        %143 = sbr.rel (%p140) target = $region12
      $region11: #{tpu_custom_call.1} parent=5 // pred_region
        %s144 = ssub.s32 %s12, 1
        // Predicated region
        $region13: #{tpu_custom_call.1} parent=11 // pred_check
          %p145 = pneg %p50
        $region14: #{tpu_custom_call.1} parent=11 // pred_check_branch
          %147 = sbr.rel (%p145) target = $region16
        $region15: #{tpu_custom_call.1} parent=11 // pred_region
          %s148 = smul.u32 2, %s21
          %p149 = scmp.lt.s32.totalorder %s148, 1
          %s150 = scalar_select %p149, %s148, 1
          %s151 = smul.addr %s150, 8
          %s152 = scalar_lea.vmem %s0, %s151
          %s153 = smul.u32 2, %s21
        $region16: #{tpu_custom_call.1} parent=11 // pred_fallthru
          _
      $region12: #{tpu_custom_call.1} parent=5 // pred_fallthru
        _
      %p154 = scmp.lt.s32.totalorder %s12, 2
      // Predicated region
      $region17: #{tpu_custom_call.1} parent=5 // pred_check
        %p155 = pneg %p154
      $region18: #{tpu_custom_call.1} parent=5 // pred_check_branch
        %157 = sbr.rel (%p155) target = $region20
      $region19: #{tpu_custom_call.1} parent=5 // pred_region
        // Predicated region
        $region21: #{tpu_custom_call.1} parent=19 // pred_check
          %p158 = pneg %p70
        $region22: #{tpu_custom_call.1} parent=19 // pred_check_branch
          %160 = sbr.rel (%p158) target = $region24
        $region23: #{tpu_custom_call.1} parent=19 // pred_region
          %p161 = scmp.lt.s32.totalorder %s20, 1
          %s162 = scalar_select %p161, %s20, 1
          %s163 = smul.addr %s162, 4
          %s164 = scalar_lea.vmem %s1, %s163
        $region24: #{tpu_custom_call.1} parent=19 // pred_fallthru
          _
        // Predicated region
        $region25: #{tpu_custom_call.1} parent=19 // pred_check
          %p165 = pneg %p96
        $region26: #{tpu_custom_call.1} parent=19 // pred_check_branch
          %167 = sbr.rel (%p165) target = $region28
        $region27: #{tpu_custom_call.1} parent=19 // pred_region
          %p168 = scmp.lt.s32.totalorder %s20, 1
          %s169 = scalar_select %p168, %s20, 1
          %s170 = scalar_lea.vmem %s2, %s169
        $region28: #{tpu_custom_call.1} parent=19 // pred_fallthru
          _
      $region20: #{tpu_custom_call.1} parent=5 // pred_fallthru
        _
      %p171 = scmp.le.s32.totalorder 1, %s12
      %p172 = scmp.lt.s32.totalorder %s12, 3
      %p173 = pnand %p171, %p172
      %p174 = pneg %p173
      // Predicated region
      $region29: #{tpu_custom_call.1} parent=5 // pred_check
        _
      $region30: #{tpu_custom_call.1} parent=5 // pred_check_branch
        %176 = sbr.rel (%p173) target = $region32
      $region31: #{tpu_custom_call.1} parent=5 // pred_region
        %s177 = ssub.s32 %s12, 1
        %s178 = smul.u32 2, %s21
        %p179 = scmp.lt.s32.totalorder %s178, 1
        %s180 = scalar_select %p179, %s178, 1
        %s181 = smul.addr %s180, 8
        %s182 = scalar_lea.vmem %s0, %s181
        %p183 = pneg %p50
        %p184 = pneg %p47
        %p185 = scmp.lt.s32.totalorder %s22, 1
        %s186 = scalar_select %p185, %s22, 1
        %s187 = smul.addr %s186, 4
        %s188 = scalar_lea.vmem %s1, %s187
        %p189 = pneg %p76
        %p190 = pneg %p73
        %p191 = scmp.lt.s32.totalorder %s22, 1
        %s192 = scalar_select %p191, %s22, 1
        %s193 = scalar_lea.vmem %s2, %s192
        %p194 = pneg %p102
        %p195 = pneg %p99
        %p196 = pneg %p130
        %p197 = pneg %p127
        %s198 = sand.u32 %s117, 1
        %s199 = scalar_lea.sflag [#allocation3], %s198
        %s200 = sand.u32 %s117, 1
        %s201 = smul.addr %s200, 8
        %s202 = scalar_lea.vmem [#allocation2], %s201
        %s203 = smul.u32 2, %s21
        %p204 = scmp.lt.s32.totalorder %s203, 1
        %s205 = scalar_select %p204, %s203, 1
        %s206 = smul.addr %s205, 8
        %s207 = scalar_lea.vmem %s0, %s206
        %s208 = smul.u32 2, %s21
        %p209 = scmp.lt.s32.totalorder %s22, 1
        %s210 = scalar_select %p209, %s22, 1
        %s211 = smul.addr %s210, 4
        %s212 = scalar_lea.vmem %s1, %s211
        %p213 = scmp.lt.s32.totalorder %s22, 1
        %s214 = scalar_select %p213, %s22, 1
        %s215 = scalar_lea.vmem %s2, %s214
        %s216 = smul.u32 2, %s21
        %v218 = vld [vmem:[%s207] sm:$0xff]
        %v219 = vld [vmem:[%s207 + $0x8] sm:$0xff]
        %v220 = vpack.c.bf16 %v219, %v218
        %v221 = vld [vmem:[%s212] sm:$0xf]
        %v222 = vld [vmem:[%s215] sm:$0x1]
        %v224 = vlaneseq
        %v225 = vshrl.u32 %v224, 7
        %v226 = vsub.s32 0, %v225
        %v227 = vrot.slane %v222, %v226
        %vm229 = vcmask 64512
        %v231 = vsel %vm229, %v220, 0
        %vm233 = vcmask 1043456
        %v235 = vsel %vm233, %v221, 0
        %237 = vmatprep.subr.bf16.mxu0 0
        %238 = vmatpush1.bf16.msra.mxu0 %v235
        %239 = vmatprep.subr.bf16.mxu0 0
        %240 = vmatpush1.bf16.msra.mxu0 0
        %241 = vmatprep.subr.bf16.mxu0 0
        %242 = vmatpush1.bf16.msra.mxu0 0
        %243 = vmatprep.subr.bf16.mxu0 0
        %244 = vmatpush1.bf16.msra.mxu0 0
        %245 = vmatprep.subr.bf16.mxu0 0
        %246 = vmatpush1.bf16.msra.mxu0 0
        %247 = vmatprep.subr.bf16.mxu0 0
        %248 = vmatpush1.bf16.msra.mxu0 0
        %249 = vmatprep.subr.bf16.mxu0 0
        %250 = vmatpush1.bf16.msra.mxu0 0
        %251 = vmatprep.subr.bf16.mxu0 0
        %252 = vmatpush1.bf16.msra.mxu0 0
        %253 = vmatprep.subr.bf16.mxu0 0
        %254 = vmatpush1.bf16.msra.mxu0 0
        %255 = vmatprep.subr.bf16.mxu0 0
        %256 = vmatpush1.bf16.msra.mxu0 0
        %257 = vmatprep.subr.bf16.mxu0 0
        %258 = vmatpush1.bf16.msra.mxu0 0
        %259 = vmatprep.subr.bf16.mxu0 0
        %260 = vmatpush1.bf16.msra.mxu0 0
        %261 = vmatprep.subr.bf16.mxu0 0
        %262 = vmatpush1.bf16.msra.mxu0 0
        %263 = vmatprep.subr.bf16.mxu0 0
        %264 = vmatpush1.bf16.msra.mxu0 0
        %265 = vmatprep.subr.bf16.mxu0 0
        %266 = vmatpush1.bf16.msra.mxu0 0
        %267 = vmatprep.subr.bf16.mxu0 0
        %268 = vmatpush1.bf16.msra.mxu0 0
        %269 = vmatprep.mubr.bf16.mxu0 0
        %270 = vmatmul.mubr.bf16.gmra.mrb[0].mxu0 %v231
        %v271 = vpop.f32.mrb[0].mxu0
        %v272 = vadd.f32 %v227, %v271
        %v273 = vpop.f32.mrb[0].mxu0
        %v274 = vpop.f32.mrb[0].mxu0
        %v275 = vadd.f32 %v227, %v274
        %v276 = vpop.f32.mrb[0].mxu0
        %277 = vdwg.mxu0
        %v278 = vmax.f32 %v272, 0.0
        %v279 = vmax.f32 %v275, 0.0
        %v280 = vpack.c.bf16 %v279, %v278
        %v282 = vunpack.c.l.b16 %v280
        %v283 = vunpack.c.h.b16 %v280
        %v284 = vpack.c.b16 %v282, %v282
        %v285 = vpack.c.b16 %v283, %v283
        %288 = vst [vmem:[%s202] sm:$0xf] %v284
        %289 = vst [vmem:[%s202 + $0x4] sm:$0xf] %v285
        %s290 = sand.u32 %s117, 1
        %s291 = scalar_lea.sflag [#allocation3], %s290
        %s292 = sand.u32 %s117, 1
        %s293 = smul.addr %s292, 8
        %s294 = scalar_lea.vmem [#allocation2], %s293
        // Predicated region
        $region33: #{tpu_custom_call.1} parent=31 // pred_check
          %p295 = pneg %p127
        $region34: #{tpu_custom_call.1} parent=31 // pred_check_branch
          %297 = sbr.rel (%p295) target = $region36
        $region35: #{tpu_custom_call.1} parent=31 // pred_region
          %s298 = smul.u32 2, %s21
          %s300 = ssub.s32 128, 128
          %301 = vsyncadd %s291, %s300
          %s302 = smul.addr %s298, 2
          %s303 = sadd.s32 %s22, %s302
          %s304 = smul.addr %s303, 64
          %s305 = scalar_lea.hbm %s3, %s304
          %s306 = sshll.u32 %s294, 4
          %s307 = int_to_ptr.vmem [resolvable:$true] %s306
          %312 = dma.vmem_to_hbm [thread:$0]  %s307, 128, %s305, %s291, 64, 128, 4
        $region36: #{tpu_custom_call.1} parent=31 // pred_fallthru
          _
      $region32: #{tpu_custom_call.1} parent=5 // pred_fallthru
        _
      %p313 = scmp.le.s32.totalorder 2, %s12
      // Predicated region
      $region37: #{tpu_custom_call.1} parent=5 // pred_check
        %p314 = pneg %p313
      $region38: #{tpu_custom_call.1} parent=5 // pred_check_branch
        %316 = sbr.rel (%p314) target = $region40
      $region39: #{tpu_custom_call.1} parent=5 // pred_region
        %s317 = ssub.s32 %s12, 2
        // Predicated region
        $region41: #{tpu_custom_call.1} parent=39 // pred_check
          %p318 = pneg %p133
        $region42: #{tpu_custom_call.1} parent=39 // pred_check_branch
          %320 = sbr.rel (%p318) target = $region44
        $region43: #{tpu_custom_call.1} parent=39 // pred_region
          %s321 = sand.u32 %s118, 1
          %s322 = scalar_lea.sflag [#allocation3], %s321
          %s323 = sand.u32 %s118, 1
          %s324 = smul.addr %s323, 8
          %s325 = scalar_lea.vmem [#allocation2], %s324
          %326 = dma.done %s322, 128
        $region44: #{tpu_custom_call.1} parent=39 // pred_fallthru
          _
      $region40: #{tpu_custom_call.1} parent=5 // pred_fallthru
        _
    $region6: #{tpu_custom_call.1} parent=1 // loop_footer
      %s16 = sadd.s32 1, %s12
    $region7: #{tpu_custom_call.1} parent=1 // loop_footer_branch
      %11 = sbr.rel target = $region3
    $region8: #{tpu_custom_call.1} parent=1 // loop_exit
      _
    %327 = vsyncpa [#allocation3], 1
    %s328 = scalar_lea.sflag [#allocation3], 1
    %329 = vsyncpa %s328, 1

</llo_original>
